<compile_context>
chip_gen: v6e
topology: v6e:2x2x1
jax: 0.10.0
libtpu: 0.0.40
codegen_flags: <defaults>
</compile_context>

<pallas_src>
import jax
import jax.numpy as jnp
from jax.experimental import pallas as pl
from jax.experimental.pallas import tpu as pltpu

FEATURES = 10        # model feature width (Linear(10, 10))
LANES = 128          # lane padding target for the fused-weight output dim
TM_TARGET = 512      # batch tile (rows) for the pipelined grid at large B


def _fused_linear_kernel(x_ref, w_ref, b_ref, o_ref):
    """out = x @ W_fused + b_fused  (single MXU matmul, f32 accumulate).

    x_ref: (TM, 10) input dtype   w_ref: (10, 128) bf16 (resident)
    b_ref: (1, 128) f32 (resident) o_ref: (TM, 10) input dtype
    """
    x = x_ref[...].astype(w_ref.dtype)                              # bf16 operands for MXU
    y = jnp.dot(x, w_ref[...], preferred_element_type=jnp.float32)  # (TM, 128) f32 acc
    y = y + b_ref[...]                                              # bias add in f32 (VPU)
    o_ref[...] = y[:, : o_ref.shape[-1]].astype(o_ref.dtype)        # narrow store (10 lanes)


def prepare_fused_params(w0, b0, w1, b1, lanes=LANES, compute_dtype=jnp.bfloat16):
    """One-time parameter prep (NOT in the forward hot path).

    w0/w1: (out, in) PyTorch layout; b0/b1: (out,).
    Fusion is done in f32 (exact); only the fused weight is cast to bf16.
    Returns weight (10, lanes) in `compute_dtype` and bias (1, lanes) in f32.
    """
    w0 = jnp.asarray(w0, jnp.float32)
    w1 = jnp.asarray(w1, jnp.float32)
    b0 = jnp.asarray(b0, jnp.float32)
    b1 = jnp.asarray(b1, jnp.float32)

    # y = x @ W0^T @ W1^T + (b0 @ W1^T + b1)
    w_fused = w0.T @ w1.T                      # (in0, out1) = (10, 10)
    b_fused = b0 @ w1.T + b1                   # (10,)

    f_in, f_out = w_fused.shape
    # Pad only the output (lane) dim -> lane-dense MXU result tile. The
    # contraction dim stays at its true width (10): no extra HBM read traffic.
    w_pad = jnp.zeros((f_in, lanes), jnp.float32).at[:, :f_out].set(w_fused)
    b_pad = jnp.zeros((1, lanes), jnp.float32).at[0, :f_out].set(b_fused)
    return w_pad.astype(compute_dtype), b_pad  # bias stays f32 (v5e VPU has no bf16)


def _input_spec(tm, f, index_map, num_tiles):
    """x streaming spec; deepen buffering when there are enough steps to overlap DMA."""
    buffered = getattr(pl, "Buffered", None)
    if buffered is not None and num_tiles >= 3:
        try:
            return pl.BlockSpec((tm, f), index_map, pipeline_mode=buffered(3))
        except TypeError:  # older jax without pipeline_mode kwarg
            pass
    return pl.BlockSpec((tm, f), index_map)


@jax.jit
def simple_model_with_module_dict(x, w_fused, b_fused):
    """Forward pass.  x: (B, 10) -> (B, 10).  w_fused: (10, 128) bf16, b_fused: (1, 128) f32."""
    B, F = x.shape
    lanes = w_fused.shape[-1]

    if B <= TM_TARGET:
        tm = B                       # single full-extent tile (legal for any B, incl. B=2)
        num_tiles = 1
    else:
        tm = TM_TARGET               # multiple of 8 -> (8,128) rule satisfied; pipelined
        num_tiles = pl.cdiv(B, tm)   # last tile may be partial; OOB rows are masked on store

    x_spec = _input_spec(tm, F, lambda i: (i, 0), num_tiles)
    w_spec = pl.BlockSpec((F, lanes), lambda i: (0, 0))   # resident: DMA'd once, reused
    b_spec = pl.BlockSpec((1, lanes), lambda i: (0, 0))   # resident
    o_spec = pl.BlockSpec((tm, F), lambda i: (i, 0))

    cost = pl.CostEstimate(
        flops=2 * B * F * F,                               # real work, not padded work
        transcendentals=0,
        bytes_accessed=(B * F * x.dtype.itemsize           # x read
                        + F * lanes * w_fused.dtype.itemsize
                        + lanes * b_fused.dtype.itemsize
                        + B * F * x.dtype.itemsize),       # out write
    )

    return pl.pallas_call(
        _fused_linear_kernel,
        grid=(num_tiles,),
        in_specs=[x_spec, w_spec, b_spec],
        out_specs=o_spec,
        out_shape=jax.ShapeDtypeStruct((B, F), x.dtype),
        compiler_params=pltpu.CompilerParams(
            dimension_semantics=("parallel",),             # 2x on v7x's two TensorCores
        ),
        cost_estimate=cost,
    )(x, w_fused, b_fused)


def _init_linear_params(key, in_features, out_features, dtype=jnp.float32):
    """Deterministic init matching nn.Linear's default U(-1/sqrt(in), 1/sqrt(in))."""
    kw, kb = jax.random.split(key)
    bound = 1.0 / jnp.sqrt(jnp.asarray(in_features, dtype))
    w = jax.random.uniform(kw, (out_features, in_features), dtype, -bound, bound)
    b = jax.random.uniform(kb, (out_features,), dtype, -bound, bound)
    return w, b


if __name__ == "__main__":
    key = jax.random.PRNGKey(0)
    k_x, k_l0, k_l1, k_big = jax.random.split(key, 4)

    B, F = 2, FEATURES
    x = jax.random.normal(k_x, (B, F), jnp.float32)

    w0, b0 = _init_linear_params(k_l0, F, F)   # bla['0']
    w1, b1 = _init_linear_params(k_l1, F, F)   # bla['1']

    # One-time parameter preparation (outside the forward hot path).
    w_fused, b_fused = prepare_fused_params(w0, b0, w1, b1)

    # Small batch (module's nominal shape): single full-extent tile path.
    out = jax.block_until_ready(simple_model_with_module_dict(x, w_fused, b_fused))
    ref = (x @ w0.T + b0) @ w1.T + b1          # f32 two-layer reference (PyTorch math)
    assert out.shape == (B, F)
    assert jnp.allclose(out, ref, atol=3e-2, rtol=3e-2)   # bf16-operand tolerance

    # Larger batch exercises the pipelined batch grid (3 tiles, incl. a partial one).
    Bb = 1040
    xb = jax.random.normal(k_big, (Bb, F), jnp.float32)
    outb = jax.block_until_ready(simple_model_with_module_dict(xb, w_fused, b_fused))
    refb = (xb @ w0.T + b0) @ w1.T + b1
    assert outb.shape == (Bb, F)
    assert jnp.allclose(outb, refb, atol=3e-2, rtol=3e-2)

    print("KERNEL_OK")
</pallas_src>

<mosaic_0001>
module attributes {stable_mosaic.version = 11 : i64} {
  func.func @_fused_linear_kernel(%arg0: i32, %arg1: memref<2x10xf32, #tpu.memory_space<vmem>>, %arg2: memref<10x128xbf16, #tpu.memory_space<vmem>>, %arg3: memref<1x128xf32, #tpu.memory_space<vmem>>, %arg4: memref<2x10xf32, #tpu.memory_space<vmem>>) attributes {dimension_semantics = [#tpu.dimension_semantics<parallel>], iteration_bounds = array<i64: 1>, scalar_prefetch = 0 : i64, scratch_operands = 0 : i64, tpu.core_type = #tpu.core_type<tc>, window_params = [{transform_indices = @transform_0, window_bounds = array<i64: 2, 10>}, {pipeline_mode = #tpu.pipeline_mode<synchronous>, transform_indices = @transform_1, window_bounds = array<i64: 10, 128>}, {pipeline_mode = #tpu.pipeline_mode<synchronous>, transform_indices = @transform_2, window_bounds = array<i64: 1, 128>}, {transform_indices = @transform_3, window_bounds = array<i64: 2, 10>}]} {
    %c0 = arith.constant 0 : index
    %c0_0 = arith.constant 0 : index
    %0 = vector.load %arg1[%c0, %c0_0] : memref<2x10xf32, #tpu.memory_space<vmem>>, vector<2x10xf32>
    %1 = arith.truncf %0 : vector<2x10xf32> to vector<2x10xbf16>
    %c0_1 = arith.constant 0 : index
    %c0_2 = arith.constant 0 : index
    %2 = vector.load %arg2[%c0_1, %c0_2] : memref<10x128xbf16, #tpu.memory_space<vmem>>, vector<10x128xbf16>
    %cst = arith.constant dense<0.000000e+00> : vector<2x128xf32>
    %3 = tpu.matmul %1, %2, %cst {dimension_numbers = #tpu.dot_dimension_numbers<[1], [0], [0], [1], [0, 0, 1, 1], [], []>} : vector<2x10xbf16>, vector<10x128xbf16>, vector<2x128xf32> -> vector<2x128xf32>
    %c0_3 = arith.constant 0 : index
    %c0_4 = arith.constant 0 : index
    %4 = vector.load %arg3[%c0_3, %c0_4] : memref<1x128xf32, #tpu.memory_space<vmem>>, vector<1x128xf32>
    %5 = vector.broadcast %4 : vector<1x128xf32> to vector<2x128xf32>
    %6 = arith.addf %3, %5 : vector<2x128xf32>
    %7 = vector.extract_strided_slice %6 {offsets = [0, 0], sizes = [2, 10], strides = [1, 1]} : vector<2x128xf32> to vector<2x10xf32>
    %c0_5 = arith.constant 0 : index
    %c0_6 = arith.constant 0 : index
    %8 = vector.load %arg4[%c0_5, %c0_6] : memref<2x10xf32, #tpu.memory_space<vmem>>, vector<2x10xf32>
    tpu.vector_store %arg4[%c0_5, %c0_6], %7 {strides = array<i32>} : memref<2x10xf32, #tpu.memory_space<vmem>>, vector<2x10xf32>,
    return
  }
  func.func @transform_0(%arg0: i32) -> (i32, i32) {
    %c0_i32 = arith.constant 0 : i32
    %c0_i32_0 = arith.constant 0 : i32
    return %arg0, %c0_i32 : i32, i32
  }
  func.func @transform_1(%arg0: i32) -> (i32, i32) {
    %c0_i32 = arith.constant 0 : i32
    %c0_i32_0 = arith.constant 0 : i32
    %c0_i32_1 = arith.constant 0 : i32
    return %c0_i32, %c0_i32_0 : i32, i32
  }
  func.func @transform_2(%arg0: i32) -> (i32, i32) {
    %c0_i32 = arith.constant 0 : i32
    %c0_i32_0 = arith.constant 0 : i32
    %c0_i32_1 = arith.constant 0 : i32
    return %c0_i32, %c0_i32_0 : i32, i32
  }
  func.func @transform_3(%arg0: i32) -> (i32, i32) {
    %c0_i32 = arith.constant 0 : i32
    %c0_i32_0 = arith.constant 0 : i32
    return %arg0, %c0_i32 : i32, i32
  }
}

</mosaic_0001>

<llo_original>
// kernel: simple_model_with_module_dict.1
$region0: #{simple_model_with_module_dict.1}
  #allocation0 [shape = 'u32[]', space=smem, size = 0x4, offset = 0x4, fixed_abs, tag = 'smem constant byte address 0x4 - core index']
  #allocation1 [shape = 'u32[144,128]{1,0:T(1,128)}', space=vmem, size = 0x12000, scoped, tag = 'internal scratch']
  %s0 = inlined_call_operand.hbm [shape: f32[2,10], index: 0, kind: input, shape index: {}]
  %s1 = inlined_call_operand.hbm [shape: bf16[10,128], index: 1, kind: input, shape index: {}]
  %s2 = inlined_call_operand.vmem [shape: f32[1,128], index: 2, kind: input, shape index: {}]
  %s3 = inlined_call_operand.hbm [shape: f32[2,10], index: 3, kind: output, shape index: {}]
  %s4 = sld [smem:[#allocation0]]
  $region30: #{simple_model_with_module_dict.1} parent=0
    _
  %s6 = ssub.s32 1, %s4
  %s7 = scalar_select 0, %s6, %s4
  $region1: #{simple_model_with_module_dict.1} parent=0
    #allocation2 [shape = 'u8[1024]{0}', space=vmem, size = 0x400, scoped, tag = 'input window, operand 0, single buffered']
    #allocation3 [shape = 's32[1]{0}', space=sflag, size = 0x4, scoped, tag = 'scoped memory for simple_model_with_module_dict.1']
    #allocation4 [shape = 's32[1]{0}', space=sflag, size = 0x4, scoped, tag = 'scoped memory for simple_model_with_module_dict.1']
    #allocation5 [shape = 'u8[4096]{0}', space=vmem, size = 0x1000, scoped, tag = 'input window, operand 1, single buffered']
    #allocation6 [shape = 's32[1]{0}', space=sflag, size = 0x4, scoped, tag = 'scoped memory for simple_model_with_module_dict.1']
    #allocation7 [shape = 'u8[1024]{0}', space=vmem, size = 0x400, scoped, tag = 'output window, operand 0, single buffered']
    %8 = vsyncpa [#allocation3], 0
    %9 = vsyncpa [#allocation6], 0
    %10 = vsyncpa [#allocation4], 0
    // Predicated region
    $region2: #{simple_model_with_module_dict.1} parent=1 // pred_check
      _
    $region3: #{simple_model_with_module_dict.1} parent=1 // pred_check_branch
      %12 = sbr.rel (0) target = $region5
    $region4: #{simple_model_with_module_dict.1} parent=1 // pred_region
      %s14 = ssub.s32 32, 32
      %15 = vsyncadd [#allocation3], %s14
      %s17 = sshll.u32 [#allocation2], 4
      %s18 = int_to_ptr.vmem [resolvable:$true] %s17
      %20 = dma.hbm_to_vmem [thread:$0]  %s0, 32, %s18, [#allocation3]
    $region5: #{simple_model_with_module_dict.1} parent=1 // pred_fallthru
      _
    // Predicated region
    $region6: #{simple_model_with_module_dict.1} parent=1 // pred_check
      _
    $region7: #{simple_model_with_module_dict.1} parent=1 // pred_check_branch
      %22 = sbr.rel (0) target = $region9
    $region8: #{simple_model_with_module_dict.1} parent=1 // pred_region
      %s24 = ssub.s32 128, 128
      %25 = vsyncadd [#allocation6], %s24
      %s26 = sshll.u32 [#allocation5], 4
      %s27 = int_to_ptr.vmem [resolvable:$true] %s26
      %32 = dma.hbm_to_vmem [thread:$0]  %s1, 128, %s27, [#allocation6], 64, 64, 4
    $region9: #{simple_model_with_module_dict.1} parent=1 // pred_fallthru
      _
    // Predicated region
    $region10: #{simple_model_with_module_dict.1} parent=1 // pred_check
      _
    $region11: #{simple_model_with_module_dict.1} parent=1 // pred_check_branch
      %34 = sbr.rel (0) target = $region13
    $region12: #{simple_model_with_module_dict.1} parent=1 // pred_region
      _
    $region13: #{simple_model_with_module_dict.1} parent=1 // pred_fallthru
      _
    // Predicated region
    $region14: #{simple_model_with_module_dict.1} parent=1 // pred_check
      _
    $region15: #{simple_model_with_module_dict.1} parent=1 // pred_check_branch
      %36 = sbr.rel (0) target = $region17
    $region16: #{simple_model_with_module_dict.1} parent=1 // pred_region
      %37 = dma.done [#allocation3], 32
    $region17: #{simple_model_with_module_dict.1} parent=1 // pred_fallthru
      _
    // Predicated region
    $region18: #{simple_model_with_module_dict.1} parent=1 // pred_check
      _
    $region19: #{simple_model_with_module_dict.1} parent=1 // pred_check_branch
      %39 = sbr.rel (0) target = $region21
    $region20: #{simple_model_with_module_dict.1} parent=1 // pred_region
      %40 = dma.done [#allocation6], 128
    $region21: #{simple_model_with_module_dict.1} parent=1 // pred_fallthru
      _
    %v42 = vld [vmem:[#allocation2] sm:$0x3]
    %v43 = vpack.c.bf16 %v42, %v42
    %v44 = vld [vmem:[#allocation5] sm:$0xf]
    %v45 = vld [vmem:[#allocation5 + $0x4] sm:$0x1]
    %v46 = vld [vmem:[%s2] sm:$0x1]
    %v48 = vlaneseq
    %v49 = vshrl.u32 %v48, 7
    %v50 = vsub.s32 0, %v49
    %v51 = vrot.slane %v46, %v50
    %v55 = vunpack.c.l.b16 %v44
    %v56 = vunpack.c.l.b16 %v45
    %v57 = vpack.c.b16 %v56, %v55
    %vm58 = vcmask 80896
    %v60 = vsel %vm58, %v43, 0
    %vm62 = vcmask 1044480
    %v64 = vsel %vm62, %v57, 0
    %66 = vmatprep.subr.bf16.mxu0 0
    %67 = vmatpush1.bf16.msra.mxu0 0
    %68 = vmatprep.subr.bf16.mxu0 0
    %69 = vmatpush1.bf16.msra.mxu0 0
    %70 = vmatprep.subr.bf16.mxu0 0
    %71 = vmatpush1.bf16.msra.mxu0 0
    %72 = vmatprep.subr.bf16.mxu0 0
    %73 = vmatpush1.bf16.msra.mxu0 0
    %74 = vmatprep.subr.bf16.mxu0 0
    %75 = vmatpush1.bf16.msra.mxu0 0
    %76 = vmatprep.subr.bf16.mxu0 0
    %77 = vmatpush1.bf16.msra.mxu0 0
    %78 = vmatprep.subr.bf16.mxu0 0
    %79 = vmatpush1.bf16.msra.mxu0 0
    %80 = vmatprep.subr.bf16.mxu0 0
    %81 = vmatpush1.bf16.msra.mxu0 %v64
    %82 = vmatprep.subr.bf16.mxu0 0
    %83 = vmatpush2.bf16.msra.mxu0 0
    %84 = vmatprep.subr.bf16.mxu0 0
    %85 = vmatpush2.bf16.msra.mxu0 0
    %86 = vmatprep.subr.bf16.mxu0 0
    %87 = vmatpush2.bf16.msra.mxu0 0
    %88 = vmatprep.subr.bf16.mxu0 0
    %89 = vmatpush2.bf16.msra.mxu0 0
    %90 = vmatprep.subr.bf16.mxu0 0
    %91 = vmatpush2.bf16.msra.mxu0 0
    %92 = vmatprep.subr.bf16.mxu0 0
    %93 = vmatpush2.bf16.msra.mxu0 0
    %94 = vmatprep.subr.bf16.mxu0 0
    %95 = vmatpush2.bf16.msra.mxu0 0
    %96 = vmatprep.subr.bf16.mxu0 0
    %97 = vmatpush2.bf16.msra.mxu0 0
    %98 = vmatprep.mubr.bf16.mxu0 0
    %99 = vmatmul.mubr.bf16.gmra.mxu0 %v60
    %v100 = vpop.f32.mrf.mxu0
    %v101 = vadd.f32 %v51, %v100
    %v102 = vpop.f32.mrf.mxu0
    %v103 = vpop.f32.mrf.mxu0
    %v104 = vpop.f32.mrf.mxu0
    %105 = vdwg.mxu0
    %vm106 = vcmask 74752
    %107 = vst.msk [vmem:[#allocation7] sm:$0x3] %vm106, %v101
    // Predicated region
    $region22: #{simple_model_with_module_dict.1} parent=1 // pred_check
      _
    $region23: #{simple_model_with_module_dict.1} parent=1 // pred_check_branch
      %109 = sbr.rel (0) target = $region25
    $region24: #{simple_model_with_module_dict.1} parent=1 // pred_region
      %s111 = ssub.s32 32, 32
      %112 = vsyncadd [#allocation4], %s111
      %s114 = sshll.u32 [#allocation7], 4
      %s115 = int_to_ptr.vmem [resolvable:$true] %s114
      %117 = dma.vmem_to_hbm [thread:$0]  %s115, 32, %s3, [#allocation4]
    $region25: #{simple_model_with_module_dict.1} parent=1 // pred_fallthru
      _
    // Predicated region
    $region26: #{simple_model_with_module_dict.1} parent=1 // pred_check
      _
    $region27: #{simple_model_with_module_dict.1} parent=1 // pred_check_branch
      %119 = sbr.rel (0) target = $region29
    $region28: #{simple_model_with_module_dict.1} parent=1 // pred_region
      %120 = dma.done [#allocation4], 32
    $region29: #{simple_model_with_module_dict.1} parent=1 // pred_fallthru
      _
    %121 = vsyncpa [#allocation3], 1
    %122 = vsyncpa [#allocation6], 1
    %123 = vsyncpa [#allocation4], 1

</llo_original>
